<compile_context>
chip_gen: v5e
topology: v5e:2x2
jax: 0.10.0
libtpu: 0.0.40
codegen_flags: <defaults>
</compile_context>

<pallas_src>
import functools

import jax
import jax.numpy as jnp
from jax import lax
from jax.experimental import pallas as pl
from jax.experimental.pallas import tpu as pltpu


def _round_up(x, m):
    return (x + m - 1) // m * m


def _fused_enc_dec_attn_kernel(bias_ref,    # (tb, sb)        f32  additive mask (0 / -1e30)
                               src_ref,     # (sb, emb)       bf16 folded src embeddings
                               tgt_ref,     # (tb, emb)       bf16 folded tgt embeddings
                               w_enc_ref,   # (emb, hidden_p) bf16
                               w_dec_ref,   # (emb, hidden_p) bf16
                               w_ctx_ref,   # (hidden_p, hidden_p) bf16
                               w_out_ref,   # (hidden_p, hidden_p) bf16
                               sel_ref,     # (sb, src_len_p) bf16 0/1 fold matrix
                               dec_ref,     # (tb, hidden_p)  f32
                               attn_ref,    # (tb, src_len_p) f32
                               *, hidden):
    """One-shot encoder + decoder + attention bridge, batch folded into M."""
    # Encoder memory bank and decoder queries: bf16 operands on the MXU,
    # f32 accumulation, f32 tanh.
    memory = jnp.tanh(jnp.dot(src_ref[...], w_enc_ref[...],
                              preferred_element_type=jnp.float32))   # (sb, hidden_p)
    query = jnp.tanh(jnp.dot(tgt_ref[...], w_dec_ref[...],
                             preferred_element_type=jnp.float32))    # (tb, hidden_p)
    # Cast once and reuse (Mosaic does not reliably CSE duplicate converts).
    memory_bf = memory.astype(jnp.bfloat16)
    query_bf = query.astype(jnp.bfloat16)

    # Scaled dot-product scores over the folded memory bank; contraction on
    # dim 1 of both operands (MXU-native transposed-RHS path, no vxpose).
    scale = jnp.float32(1.0 / (hidden ** 0.5))
    scores = lax.dot_general(query_bf, memory_bf,
                             dimension_numbers=(((1,), (1,)), ((), ())),
                             preferred_element_type=jnp.float32)     # (tb, sb)
    # Precomputed additive mask: 0 where (same batch, s < lengths[b]), else -1e30.
    scores = scores * scale + bias_ref[...]

    # Exact softmax (masked entries underflow to exactly 0 in f32, so this is
    # the per-batch softmax despite the folded layout).
    m = jnp.max(scores, axis=-1, keepdims=True)
    p = jnp.exp(scores - m)
    attn_full = p / jnp.sum(p, axis=-1, keepdims=True)               # (tb, sb) f32
    attn_bf = attn_full.astype(jnp.bfloat16)

    # Context over the folded memory bank (cross-batch weights are exactly 0).
    ctx_bf = jnp.dot(attn_bf, memory_bf,
                     preferred_element_type=jnp.float32).astype(jnp.bfloat16)

    # Output projection: two accumulating K=hidden_p matmuls (no concat temp).
    dec_ref[...] = jnp.tanh(
        jnp.dot(ctx_bf, w_ctx_ref[...], preferred_element_type=jnp.float32)
        + jnp.dot(query_bf, w_out_ref[...], preferred_element_type=jnp.float32))

    # Fold interleaved (s, b) columns back to per-batch source positions with
    # the precomputed 0/1 selection matrix (bf16 operands -> single MXU pass);
    # padded columns >= src_len stay exactly 0.
    attn_ref[...] = jnp.dot(attn_bf, sel_ref[...],
                            preferred_element_type=jnp.float32)


def make_base_model_forward(params, *, src_len, tgt_len, batch):
    """One-time parameter prep; returns a jitted forward(src, tgt, lengths)."""
    emb = params["emb_src"].shape[1]
    hidden = params["w_enc"].shape[1]

    lane = 128
    hidden_p = _round_up(hidden, lane)     # lane-dense decoder-output width
    src_len_p = _round_up(src_len, lane)   # lane-dense attention-output width
    sb = src_len * batch
    tb = tgt_len * batch

    # ---- one-time weight prep (hoisted out of the per-call path) ----
    def pad(w, rows, cols):
        return jnp.zeros((rows, cols), jnp.float32).at[:w.shape[0], :w.shape[1]].set(w)

    emb_src_bf = params["emb_src"].astype(jnp.bfloat16)
    emb_tgt_bf = params["emb_tgt"].astype(jnp.bfloat16)
    w_enc_p = pad(params["w_enc"], emb, hidden_p).astype(jnp.bfloat16)
    w_dec_p = pad(params["w_dec"], emb, hidden_p).astype(jnp.bfloat16)
    w_ctx_p = pad(params["w_ctx"], hidden_p, hidden_p).astype(jnp.bfloat16)
    w_out_p = pad(params["w_out"], hidden_p, hidden_p).astype(jnp.bfloat16)

    # Static folded-index helpers: folded column c = s*batch + b.
    col = jnp.arange(sb, dtype=jnp.int32)
    col_s = col // batch
    col_b = col % batch
    row_b = jnp.arange(tb, dtype=jnp.int32) % batch
    blockdiag = col_b[None, :] == row_b[:, None]                       # (tb, sb) bool
    sel_bf = (col_s[:, None]
              == jnp.arange(src_len_p, dtype=jnp.int32)[None, :]).astype(jnp.bfloat16)

    kernel = functools.partial(_fused_enc_dec_attn_kernel, hidden=hidden)
    vmem = pl.BlockSpec(memory_space=pltpu.MemorySpace.VMEM)

    @jax.jit
    def forward(src, tgt, lengths):
        # Glue fuses under jit: embedding gathers from a bf16 table, contiguous
        # reshapes (no transposes), and the tiny additive length mask.
        src_flat = emb_src_bf[src].reshape(sb, emb)
        tgt_flat = emb_tgt_bf[tgt].reshape(tb, emb)
        valid = blockdiag & (col_s[None, :] < lengths[col_b][None, :])
        bias = jnp.where(valid, 0.0, -1e30).astype(jnp.float32)        # (tb, sb)

        # Single invocation: whole problem (<1 MiB) lives in VMEM; no grid,
        # so no per-step pipeline overhead or per-step weight DMAs.
        dec_pad, attn_pad = pl.pallas_call(
            kernel,
            out_shape=(
                jax.ShapeDtypeStruct((tb, hidden_p), jnp.float32),
                jax.ShapeDtypeStruct((tb, src_len_p), jnp.float32),
            ),
            in_specs=[vmem] * 8,
            out_specs=(vmem, vmem),
        )(bias, src_flat, tgt_flat, w_enc_p, w_dec_p, w_ctx_p, w_out_p, sel_bf)

        # Lane-padding slices + reshapes fuse under jit; rows are t-major,
        # b-minor, so the reshapes are metadata-only (no transposes).
        dec_out = dec_pad[:, :hidden].reshape(tgt_len, batch, hidden)
        attn = attn_pad[:, :src_len].reshape(tgt_len, batch, src_len)
        return dec_out, {"std": attn}

    return forward


def reference_forward(params, src, tgt, lengths):
    """Pure-JAX f32 reference of the same forward contract."""
    hidden = params["w_enc"].shape[1]
    src_len = src.shape[0]
    memory = jnp.tanh(jnp.einsum("sbe,eh->sbh", params["emb_src"][src], params["w_enc"]))
    query = jnp.tanh(jnp.einsum("tbe,eh->tbh", params["emb_tgt"][tgt], params["w_dec"]))
    scores = jnp.einsum("tbh,sbh->tbs", query, memory) / jnp.sqrt(jnp.float32(hidden))
    mask = jnp.arange(src_len)[None, :] < lengths[:, None]             # (batch, src_len)
    scores = jnp.where(mask[None, :, :], scores, -1e30)
    attn = jax.nn.softmax(scores, axis=-1)
    ctx = jnp.einsum("tbs,sbh->tbh", attn, memory)
    dec = jnp.tanh(jnp.einsum("tbh,hk->tbk", ctx, params["w_ctx"])
                   + jnp.einsum("tbh,hk->tbk", query, params["w_out"]))
    return dec, attn


def init_params(key, vocab=16, emb=32, hidden=32):
    ks = jax.random.split(key, 6)
    scale = 0.1
    return {
        "emb_src": scale * jax.random.normal(ks[0], (vocab, emb), jnp.float32),
        "emb_tgt": scale * jax.random.normal(ks[1], (vocab, emb), jnp.float32),
        "w_enc":   scale * jax.random.normal(ks[2], (emb, hidden), jnp.float32),
        "w_dec":   scale * jax.random.normal(ks[3], (emb, hidden), jnp.float32),
        "w_ctx":   scale * jax.random.normal(ks[4], (hidden, hidden), jnp.float32),
        "w_out":   scale * jax.random.normal(ks[5], (hidden, hidden), jnp.float32),
    }


if __name__ == "__main__":
    key = jax.random.PRNGKey(0)
    k_param, k_src, k_tgt = jax.random.split(key, 3)

    vocab, emb, hidden = 16, 32, 32
    src_len, tgt_len, batch = 8, 8, 2

    params = init_params(k_param, vocab=vocab, emb=emb, hidden=hidden)
    forward = make_base_model_forward(params, src_len=src_len, tgt_len=tgt_len, batch=batch)

    src = jax.random.randint(k_src, (src_len, batch), 0, vocab, dtype=jnp.int32)
    tgt = jax.random.randint(k_tgt, (tgt_len, batch), 0, vocab, dtype=jnp.int32)
    lengths = jnp.array([8, 5], dtype=jnp.int32)   # pre-padding src lengths (must be >= 1)

    dec_out, attns = forward(src, tgt, lengths)
    dec_out = jax.block_until_ready(dec_out)
    attn = jax.block_until_ready(attns["std"])

    assert dec_out.shape == (tgt_len, batch, hidden)
    assert attn.shape == (tgt_len, batch, src_len)

    # Attention rows are valid distributions (to bf16 reporting precision) and
    # respect the length mask exactly (masked columns are exactly zero).
    row_sums = jnp.sum(attn, axis=-1)
    assert bool(jnp.all(jnp.abs(row_sums - 1.0) < 5e-3))
    assert bool(jnp.all(attn[:, 1, 5:] < 1e-6))     # batch 1 has length 5

    # Cross-check against a pure-JAX f32 reference (bf16 MXU operands -> loose atol).
    dec_ref, attn_ref = reference_forward(params, src, tgt, lengths)
    assert bool(jnp.max(jnp.abs(dec_out - dec_ref)) < 2e-2)
    assert bool(jnp.max(jnp.abs(attn - attn_ref)) < 2e-2)

    # TODO(synk): update_dropout / count_parameters are training utilities with
    # no kernel-level equivalent; not implemented.
    print("KERNEL_OK")
</pallas_src>

<mosaic_0001>
module attributes {stable_mosaic.version = 11 : i64} {
  func.func @_fused_enc_dec_attn_kernel(%arg0: memref<16x16xf32, #tpu.memory_space<vmem>>, %arg1: memref<16x32xbf16, #tpu.memory_space<vmem>>, %arg2: memref<16x32xbf16, #tpu.memory_space<vmem>>, %arg3: memref<32x128xbf16, #tpu.memory_space<vmem>>, %arg4: memref<32x128xbf16, #tpu.memory_space<vmem>>, %arg5: memref<128x128xbf16, #tpu.memory_space<vmem>>, %arg6: memref<128x128xbf16, #tpu.memory_space<vmem>>, %arg7: memref<16x128xbf16, #tpu.memory_space<vmem>>, %arg8: memref<16x128xf32, #tpu.memory_space<vmem>>, %arg9: memref<16x128xf32, #tpu.memory_space<vmem>>) attributes {dimension_semantics = [], scalar_prefetch = 0 : i64, scratch_operands = 0 : i64, tpu.core_type = #tpu.core_type<tc>} {
    %c0 = arith.constant 0 : index
    %c0_0 = arith.constant 0 : index
    %0 = vector.load %arg1[%c0, %c0_0] : memref<16x32xbf16, #tpu.memory_space<vmem>>, vector<16x32xbf16>
    %c0_1 = arith.constant 0 : index
    %c0_2 = arith.constant 0 : index
    %1 = vector.load %arg3[%c0_1, %c0_2] : memref<32x128xbf16, #tpu.memory_space<vmem>>, vector<32x128xbf16>
    %cst = arith.constant dense<0.000000e+00> : vector<16x128xf32>
    %2 = tpu.matmul %0, %1, %cst {dimension_numbers = #tpu.dot_dimension_numbers<[1], [0], [0], [1], [0, 0, 1, 1], [], []>} : vector<16x32xbf16>, vector<32x128xbf16>, vector<16x128xf32> -> vector<16x128xf32>
    %3 = math.tanh %2 : vector<16x128xf32>
    %c0_3 = arith.constant 0 : index
    %c0_4 = arith.constant 0 : index
    %4 = vector.load %arg2[%c0_3, %c0_4] : memref<16x32xbf16, #tpu.memory_space<vmem>>, vector<16x32xbf16>
    %c0_5 = arith.constant 0 : index
    %c0_6 = arith.constant 0 : index
    %5 = vector.load %arg4[%c0_5, %c0_6] : memref<32x128xbf16, #tpu.memory_space<vmem>>, vector<32x128xbf16>
    %cst_7 = arith.constant dense<0.000000e+00> : vector<16x128xf32>
    %6 = tpu.matmul %4, %5, %cst_7 {dimension_numbers = #tpu.dot_dimension_numbers<[1], [0], [0], [1], [0, 0, 1, 1], [], []>} : vector<16x32xbf16>, vector<32x128xbf16>, vector<16x128xf32> -> vector<16x128xf32>
    %7 = math.tanh %6 : vector<16x128xf32>
    %8 = arith.truncf %3 : vector<16x128xf32> to vector<16x128xbf16>
    %9 = arith.truncf %7 : vector<16x128xf32> to vector<16x128xbf16>
    %cst_8 = arith.constant dense<0.000000e+00> : vector<16x16xf32>
    %10 = tpu.matmul %9, %8, %cst_8 {dimension_numbers = #tpu.dot_dimension_numbers<[1], [1], [0], [0], [0, 0, 1, 0], [], []>} : vector<16x128xbf16>, vector<16x128xbf16>, vector<16x16xf32> -> vector<16x16xf32>
    %cst_9 = arith.constant 0.176776692 : f32
    %11 = vector.broadcast %cst_9 : f32 to vector<16x16xf32>
    %12 = arith.mulf %10, %11 : vector<16x16xf32>
    %c0_10 = arith.constant 0 : index
    %c0_11 = arith.constant 0 : index
    %13 = vector.load %arg0[%c0_10, %c0_11] : memref<16x16xf32, #tpu.memory_space<vmem>>, vector<16x16xf32>
    %14 = arith.addf %12, %13 : vector<16x16xf32>
    %cst_12 = arith.constant dense<0xFF800000> : vector<16xf32>
    %15 = vector.multi_reduction <maximumf>, %14, %cst_12 [1] : vector<16x16xf32> to vector<16xf32>
    %16 = vector.shape_cast %15 : vector<16xf32> to vector<16x1xf32>
    %17 = vector.broadcast %16 : vector<16x1xf32> to vector<16x16xf32>
    %18 = arith.subf %14, %17 : vector<16x16xf32>
    %19 = math.exp %18 : vector<16x16xf32>
    %cst_13 = arith.constant dense<0.000000e+00> : vector<16xf32>
    %20 = vector.multi_reduction <add>, %19, %cst_13 [1] : vector<16x16xf32> to vector<16xf32>
    %21 = vector.shape_cast %20 : vector<16xf32> to vector<16x1xf32>
    %22 = vector.broadcast %21 : vector<16x1xf32> to vector<16x16xf32>
    %23 = arith.divf %19, %22 : vector<16x16xf32>
    %24 = arith.truncf %23 : vector<16x16xf32> to vector<16x16xbf16>
    %cst_14 = arith.constant dense<0.000000e+00> : vector<16x128xf32>
    %25 = tpu.matmul %24, %8, %cst_14 {dimension_numbers = #tpu.dot_dimension_numbers<[1], [0], [0], [1], [0, 0, 1, 1], [], []>} : vector<16x16xbf16>, vector<16x128xbf16>, vector<16x128xf32> -> vector<16x128xf32>
    %26 = arith.truncf %25 : vector<16x128xf32> to vector<16x128xbf16>
    %c0_15 = arith.constant 0 : index
    %c0_16 = arith.constant 0 : index
    %27 = vector.load %arg5[%c0_15, %c0_16] : memref<128x128xbf16, #tpu.memory_space<vmem>>, vector<128x128xbf16>
    %cst_17 = arith.constant dense<0.000000e+00> : vector<16x128xf32>
    %28 = tpu.matmul %26, %27, %cst_17 {dimension_numbers = #tpu.dot_dimension_numbers<[1], [0], [0], [1], [0, 0, 1, 1], [], []>} : vector<16x128xbf16>, vector<128x128xbf16>, vector<16x128xf32> -> vector<16x128xf32>
    %c0_18 = arith.constant 0 : index
    %c0_19 = arith.constant 0 : index
    %29 = vector.load %arg6[%c0_18, %c0_19] : memref<128x128xbf16, #tpu.memory_space<vmem>>, vector<128x128xbf16>
    %cst_20 = arith.constant dense<0.000000e+00> : vector<16x128xf32>
    %30 = tpu.matmul %9, %29, %cst_20 {dimension_numbers = #tpu.dot_dimension_numbers<[1], [0], [0], [1], [0, 0, 1, 1], [], []>} : vector<16x128xbf16>, vector<128x128xbf16>, vector<16x128xf32> -> vector<16x128xf32>
    %31 = arith.addf %28, %30 : vector<16x128xf32>
    %32 = math.tanh %31 : vector<16x128xf32>
    %c0_21 = arith.constant 0 : index
    %c0_22 = arith.constant 0 : index
    %33 = vector.load %arg8[%c0_21, %c0_22] : memref<16x128xf32, #tpu.memory_space<vmem>>, vector<16x128xf32>
    tpu.vector_store %arg8[%c0_21, %c0_22], %32 {strides = array<i32>} : memref<16x128xf32, #tpu.memory_space<vmem>>, vector<16x128xf32>,
    %c0_23 = arith.constant 0 : index
    %c0_24 = arith.constant 0 : index
    %34 = vector.load %arg7[%c0_23, %c0_24] : memref<16x128xbf16, #tpu.memory_space<vmem>>, vector<16x128xbf16>
    %cst_25 = arith.constant dense<0.000000e+00> : vector<16x128xf32>
    %35 = tpu.matmul %24, %34, %cst_25 {dimension_numbers = #tpu.dot_dimension_numbers<[1], [0], [0], [1], [0, 0, 1, 1], [], []>} : vector<16x16xbf16>, vector<16x128xbf16>, vector<16x128xf32> -> vector<16x128xf32>
    %c0_26 = arith.constant 0 : index
    %c0_27 = arith.constant 0 : index
    %36 = vector.load %arg9[%c0_26, %c0_27] : memref<16x128xf32, #tpu.memory_space<vmem>>, vector<16x128xf32>
    tpu.vector_store %arg9[%c0_26, %c0_27], %35 {strides = array<i32>} : memref<16x128xf32, #tpu.memory_space<vmem>>, vector<16x128xf32>,
    return
  }
}

</mosaic_0001>

<llo_original>
// kernel: forward.1
$region0: #{forward.1}
  #allocation0 [shape = 'u32[]', space=smem, size = 0x4, offset = 0x4, fixed_abs, tag = 'smem constant byte address 0x4 - core index']
  #allocation1 [shape = 'u32[72,128]{1,0:T(1,128)}', space=vmem, size = 0x9000, scoped, tag = 'internal scratch']
  %s0 = inlined_call_operand.vmem [shape: f32[16,16], index: 0, kind: input, shape index: {}]
  %s1 = inlined_call_operand.vmem [shape: bf16[16,32], index: 1, kind: input, shape index: {}]
  %s2 = inlined_call_operand.vmem [shape: bf16[16,32], index: 2, kind: input, shape index: {}]
  %s3 = inlined_call_operand.vmem [shape: bf16[32,128], index: 3, kind: input, shape index: {}]
  %s4 = inlined_call_operand.vmem [shape: bf16[32,128], index: 4, kind: input, shape index: {}]
  %s5 = inlined_call_operand.vmem [shape: bf16[128,128], index: 5, kind: input, shape index: {}]
  %s6 = inlined_call_operand.vmem [shape: bf16[128,128], index: 6, kind: input, shape index: {}]
  %s7 = inlined_call_operand.vmem [shape: bf16[16,128], index: 7, kind: input, shape index: {}]
  %s8 = inlined_call_operand.hbm [shape: f32[16,128], index: 8, kind: output, shape index: {0}]
  %s9 = inlined_call_operand.hbm [shape: f32[16,128], index: 9, kind: output, shape index: {1}]
  %10 = xla_tuple %s8, %s9
  %s11 = sld [smem:[#allocation0]]
  $region50: #{forward.1} parent=0
    _
  %s13 = ssub.s32 1, %s11
  %s14 = scalar_select 0, %s13, %s11
  $region1: #{forward.1} parent=0
    #allocation2 [shape = 'u8[8192]{0}', space=vmem, size = 0x2000, scoped, tag = 'output window, operand 0, single buffered']
    #allocation3 [shape = 's32[1]{0}', space=sflag, size = 0x4, scoped, tag = 'scoped memory for forward.1']
    #allocation4 [shape = 'u8[8192]{0}', space=vmem, size = 0x2000, scoped, tag = 'output window, operand 1, single buffered']
    #allocation5 [shape = 's32[1]{0}', space=sflag, size = 0x4, scoped, tag = 'scoped memory for forward.1']
    %15 = vsyncpa [#allocation3], 0
    %16 = vsyncpa [#allocation5], 0
    // Predicated region
    $region2: #{forward.1} parent=1 // pred_check
      _
    $region3: #{forward.1} parent=1 // pred_check_branch
      %18 = sbr.rel (0) target = $region5
    $region4: #{forward.1} parent=1 // pred_region
      _
    $region5: #{forward.1} parent=1 // pred_fallthru
      _
    // Predicated region
    $region6: #{forward.1} parent=1 // pred_check
      _
    $region7: #{forward.1} parent=1 // pred_check_branch
      %20 = sbr.rel (0) target = $region9
    $region8: #{forward.1} parent=1 // pred_region
      _
    $region9: #{forward.1} parent=1 // pred_fallthru
      _
    // Predicated region
    $region10: #{forward.1} parent=1 // pred_check
      _
    $region11: #{forward.1} parent=1 // pred_check_branch
      %22 = sbr.rel (0) target = $region13
    $region12: #{forward.1} parent=1 // pred_region
      _
    $region13: #{forward.1} parent=1 // pred_fallthru
      _
    // Predicated region
    $region14: #{forward.1} parent=1 // pred_check
      _
    $region15: #{forward.1} parent=1 // pred_check_branch
      %24 = sbr.rel (0) target = $region17
    $region16: #{forward.1} parent=1 // pred_region
      _
    $region17: #{forward.1} parent=1 // pred_fallthru
      _
    // Predicated region
    $region18: #{forward.1} parent=1 // pred_check
      _
    $region19: #{forward.1} parent=1 // pred_check_branch
      %26 = sbr.rel (0) target = $region21
    $region20: #{forward.1} parent=1 // pred_region
      _
    $region21: #{forward.1} parent=1 // pred_fallthru
      _
    // Predicated region
    $region22: #{forward.1} parent=1 // pred_check
      _
    $region23: #{forward.1} parent=1 // pred_check_branch
      %28 = sbr.rel (0) target = $region25
    $region24: #{forward.1} parent=1 // pred_region
      _
    $region25: #{forward.1} parent=1 // pred_fallthru
      _
    // Predicated region
    $region26: #{forward.1} parent=1 // pred_check
      _
    $region27: #{forward.1} parent=1 // pred_check_branch
      %30 = sbr.rel (0) target = $region29
    $region28: #{forward.1} parent=1 // pred_region
      _
    $region29: #{forward.1} parent=1 // pred_fallthru
      _
    // Predicated region
    $region30: #{forward.1} parent=1 // pred_check
      _
    $region31: #{forward.1} parent=1 // pred_check_branch
      %32 = sbr.rel (0) target = $region33
    $region32: #{forward.1} parent=1 // pred_region
      _
    $region33: #{forward.1} parent=1 // pred_fallthru
      _
    %v34 = vld [vmem:[%s1] sm:$0xf]
    %v35 = vld [vmem:[%s1 + $0x4] sm:$0xf]
    %v36 = vld [vmem:[%s3] sm:$0xf]
    %v37 = vld [vmem:[%s3 + $0x4] sm:$0xf]
    %v38 = vld [vmem:[%s3 + $0x8] sm:$0xf]
    %v39 = vld [vmem:[%s3 + $0xc] sm:$0xf]
    %v42 = vunpack.c.l.b16 %v34
    %v43 = vunpack.c.l.b16 %v35
    %v44 = vpack.c.b16 %v43, %v42
    %v49 = vunpack.c.l.b16 %v36
    %v50 = vunpack.c.l.b16 %v37
    %v51 = vunpack.c.l.b16 %v38
    %v52 = vunpack.c.l.b16 %v39
    %v53 = vpack.c.b16 %v50, %v49
    %v54 = vpack.c.b16 %v52, %v51
    %vm57 = vcmask 261120
    %v59 = vsel %vm57, %v44, 0
    %61 = vmatpush.bf16.msra.mxu0 0
    %62 = vmatpush.bf16.msra.mxu0 0
    %63 = vmatpush.bf16.msra.mxu0 0
    %64 = vmatpush.bf16.msra.mxu0 0
    %65 = vmatpush.bf16.msra.mxu0 0
    %66 = vmatpush.bf16.msra.mxu0 0
    %67 = vmatpush.bf16.msra.mxu0 %v54
    %68 = vmatpush.bf16.msra.mxu0 %v53
    %69 = vmatmul.bf16.gmra.mxu0 %v59
    %v70 = vpop.f32.mrf.mxu0
    %v71 = vadd.f32 0.0, %v70
    %v72 = vpop.f32.mrf.mxu0
    %v73 = vadd.f32 0.0, %v72
    %74 = vdwg.mxu0
    %v75 = vtanh.pop %v71
    %v76 = vtanh.pop %v73
    %v77 = vld [vmem:[%s2] sm:$0xf]
    %v78 = vld [vmem:[%s2 + $0x4] sm:$0xf]
    %v79 = vld [vmem:[%s4] sm:$0xf]
    %v80 = vld [vmem:[%s4 + $0x4] sm:$0xf]
    %v81 = vld [vmem:[%s4 + $0x8] sm:$0xf]
    %v82 = vld [vmem:[%s4 + $0xc] sm:$0xf]
    %v85 = vunpack.c.l.b16 %v77
    %v86 = vunpack.c.l.b16 %v78
    %v87 = vpack.c.b16 %v86, %v85
    %v92 = vunpack.c.l.b16 %v79
    %v93 = vunpack.c.l.b16 %v80
    %v94 = vunpack.c.l.b16 %v81
    %v95 = vunpack.c.l.b16 %v82
    %v96 = vpack.c.b16 %v93, %v92
    %v97 = vpack.c.b16 %v95, %v94
    %v101 = vsel %vm57, %v87, 0
    %103 = vmatpush.bf16.msra.mxu0 0
    %104 = vmatpush.bf16.msra.mxu0 0
    %105 = vmatpush.bf16.msra.mxu0 0
    %106 = vmatpush.bf16.msra.mxu0 0
    %107 = vmatpush.bf16.msra.mxu0 0
    %108 = vmatpush.bf16.msra.mxu0 0
    %109 = vmatpush.bf16.msra.mxu0 %v97
    %110 = vmatpush.bf16.msra.mxu0 %v96
    %111 = vmatmul.bf16.gmra.mxu0 %v101
    %v112 = vpop.f32.mrf.mxu0
    %v113 = vadd.f32 0.0, %v112
    %v114 = vpop.f32.mrf.mxu0
    %v115 = vadd.f32 0.0, %v114
    %116 = vdwg.mxu0
    %v117 = vtanh.pop %v113
    %v118 = vtanh.pop %v115
    %v119 = vpack.c.bf16 %v76, %v75
    %v120 = vpack.c.bf16 %v118, %v117
    %121 = vmatpush.bf16.xpose.msra.mxu0 0
    %122 = vmatpush.bf16.xpose.msra.mxu0 0
    %123 = vmatpush.bf16.xpose.msra.mxu0 0
    %124 = vmatpush.bf16.xpose.msra.mxu0 0
    %125 = vmatpush.bf16.xpose.msra.mxu0 0
    %126 = vmatpush.bf16.xpose.msra.mxu0 0
    %127 = vmatpush.bf16.xpose.msra.mxu0 0
    %128 = vmatpush.bf16.xpose.msra.mxu0 %v119
    %129 = vmatmul.bf16.gmra.mxu0 %v120
    %v130 = vpop.f32.mrf.mxu0
    %v131 = vadd.f32 0.0, %v130
    %v132 = vpop.f32.mrf.mxu0
    %v133 = vadd.f32 0.0, %v132
    %134 = vdwg.mxu0
    %v135 = vmul.f32 %v131, 0.17677669
    %v136 = vmul.f32 %v133, 0.17677669
    %v137 = vld [vmem:[%s0] sm:$0xff]
    %v138 = vld [vmem:[%s0 + $0x8] sm:$0xff]
    %v139 = vadd.f32 %v135, %v137
    %v140 = vadd.f32 %v136, %v138
    %vm141 = vcmask 130048
    %v142 = vsel %vm141, %v139, -inf
    %143 = vmax.xlane.f32.xlu0 %v142
    %v144 = vpop.xlane.xlu0 %143
    %v145 = vsel %vm141, %v140, -inf
    %146 = vmax.xlane.f32.xlu0 %v145
    %v147 = vpop.xlane.xlu0 %146
    %v148 = vsub.f32 %v139, %v144
    %v149 = vsub.f32 %v140, %v147
    %v150 = vmul.f32 %v148, 1.442695
    %v151 = vpow.pop %v150
    %v152 = vmul.f32 %v149, 1.442695
    %v153 = vpow.pop %v152
    %v154 = vsel %vm141, %v151, 0.0
    %155 = vadd.xlane.f32.xlu0 %v154
    %v156 = vpop.xlane.xlu0 %155
    %v157 = vsel %vm141, %v153, 0.0
    %158 = vadd.xlane.f32.xlu0 %v157
    %v159 = vpop.xlane.xlu0 %158
    %v160 = vrcp.pop %v156
    %v161 = vmul.f32 %v156, %v160
    %v162 = vsub.f32 1.0, %v161
    %v163 = vmul.f32 %v160, %v162
    %v164 = vadd.f32 %v160, %v163
    %vm165 = vweird.f32 %v156
    %vm166 = vweird.f32 %v160
    %vm167 = vmor %vm165, %vm166
    %v168 = vsel %vm167, %v160, %v164
    %v169 = vand.u32 2147483647, %v156
    %vm170 = vcmp.eq.f32.partialorder %v169, 8.507059e+37
    %v171 = vand.u32 %v156, 2147483648
    %v172 = vor.u32 1.1754944e-38, %v171
    %v173 = vsel %vm170, %v172, %v168
    %v174 = vmul.f32 %v151, %v173
    %v175 = vrcp.pop %v159
    %v176 = vmul.f32 %v159, %v175
    %v177 = vsub.f32 1.0, %v176
    %v178 = vmul.f32 %v175, %v177
    %v179 = vadd.f32 %v175, %v178
    %vm180 = vweird.f32 %v159
    %vm181 = vweird.f32 %v175
    %vm182 = vmor %vm180, %vm181
    %v183 = vsel %vm182, %v175, %v179
    %v184 = vand.u32 2147483647, %v159
    %vm185 = vcmp.eq.f32.partialorder %v184, 8.507059e+37
    %v186 = vand.u32 %v159, 2147483648
    %v187 = vor.u32 1.1754944e-38, %v186
    %v188 = vsel %vm185, %v187, %v183
    %v189 = vmul.f32 %v153, %v188
    %v190 = vpack.c.bf16 %v189, %v174
    %v192 = vsel %vm141, %v190, 0
    %194 = vmatpush.bf16.msra.mxu0 0
    %195 = vmatpush.bf16.msra.mxu0 0
    %196 = vmatpush.bf16.msra.mxu0 0
    %197 = vmatpush.bf16.msra.mxu0 0
    %198 = vmatpush.bf16.msra.mxu0 0
    %199 = vmatpush.bf16.msra.mxu0 0
    %200 = vmatpush.bf16.msra.mxu0 0
    %201 = vmatpush.bf16.msra.mxu0 %v119
    %202 = vmatmul.bf16.gmra.mxu0 %v192
    %v203 = vpop.f32.mrf.mxu0
    %v204 = vadd.f32 0.0, %v203
    %v205 = vpop.f32.mrf.mxu0
    %v206 = vadd.f32 0.0, %v205
    %207 = vdwg.mxu0
    %v208 = vpack.c.bf16 %v206, %v204
    %v209 = vld [vmem:[%s5] sm:$0xf]
    %v210 = vld [vmem:[%s5 + $0x4] sm:$0xf]
    %v211 = vld [vmem:[%s5 + $0x8] sm:$0xf]
    %v212 = vld [vmem:[%s5 + $0xc] sm:$0xf]
    %v213 = vld [vmem:[%s5 + $0x10] sm:$0xf]
    %v214 = vld [vmem:[%s5 + $0x14] sm:$0xf]
    %v215 = vld [vmem:[%s5 + $0x18] sm:$0xf]
    %v216 = vld [vmem:[%s5 + $0x1c] sm:$0xf]
    %v217 = vld [vmem:[%s5 + $0x20] sm:$0xf]
    %v218 = vld [vmem:[%s5 + $0x24] sm:$0xf]
    %v219 = vld [vmem:[%s5 + $0x28] sm:$0xf]
    %v220 = vld [vmem:[%s5 + $0x2c] sm:$0xf]
    %v221 = vld [vmem:[%s5 + $0x30] sm:$0xf]
    %v222 = vld [vmem:[%s5 + $0x34] sm:$0xf]
    %v223 = vld [vmem:[%s5 + $0x38] sm:$0xf]
    %v224 = vld [vmem:[%s5 + $0x3c] sm:$0xf]
    %v225 = vld [vmem:[%s6] sm:$0xf]
    %v226 = vld [vmem:[%s6 + $0x4] sm:$0xf]
    %v227 = vld [vmem:[%s6 + $0x8] sm:$0xf]
    %v228 = vld [vmem:[%s6 + $0xc] sm:$0xf]
    %v229 = vld [vmem:[%s6 + $0x10] sm:$0xf]
    %v230 = vld [vmem:[%s6 + $0x14] sm:$0xf]
    %v231 = vld [vmem:[%s6 + $0x18] sm:$0xf]
    %v232 = vld [vmem:[%s6 + $0x1c] sm:$0xf]
    %v233 = vld [vmem:[%s6 + $0x20] sm:$0xf]
    %v234 = vld [vmem:[%s6 + $0x24] sm:$0xf]
    %v235 = vld [vmem:[%s6 + $0x28] sm:$0xf]
    %v236 = vld [vmem:[%s6 + $0x2c] sm:$0xf]
    %v237 = vld [vmem:[%s6 + $0x30] sm:$0xf]
    %v238 = vld [vmem:[%s6 + $0x34] sm:$0xf]
    %v239 = vld [vmem:[%s6 + $0x38] sm:$0xf]
    %v240 = vld [vmem:[%s6 + $0x3c] sm:$0xf]
    %v257 = vunpack.c.l.b16 %v225
    %v258 = vunpack.c.l.b16 %v226
    %v259 = vunpack.c.l.b16 %v227
    %v260 = vunpack.c.l.b16 %v228
    %v261 = vunpack.c.l.b16 %v229
    %v262 = vunpack.c.l.b16 %v230
    %v263 = vunpack.c.l.b16 %v231
    %v264 = vunpack.c.l.b16 %v232
    %v265 = vunpack.c.l.b16 %v233
    %v266 = vunpack.c.l.b16 %v234
    %v267 = vunpack.c.l.b16 %v235
    %v268 = vunpack.c.l.b16 %v236
    %v269 = vunpack.c.l.b16 %v237
    %v270 = vunpack.c.l.b16 %v238
    %v271 = vunpack.c.l.b16 %v239
    %v272 = vunpack.c.l.b16 %v240
    %v273 = vpack.c.b16 %v258, %v257
    %v274 = vpack.c.b16 %v260, %v259
    %v275 = vpack.c.b16 %v262, %v261
    %v276 = vpack.c.b16 %v264, %v263
    %v277 = vpack.c.b16 %v266, %v265
    %v278 = vpack.c.b16 %v268, %v267
    %v279 = vpack.c.b16 %v270, %v269
    %v280 = vpack.c.b16 %v272, %v271
    %289 = vmatpush.bf16.msra.mxu0 %v280
    %290 = vmatpush.bf16.msra.mxu0 %v279
    %291 = vmatpush.bf16.msra.mxu0 %v278
    %292 = vmatpush.bf16.msra.mxu0 %v277
    %293 = vmatpush.bf16.msra.mxu0 %v276
    %294 = vmatpush.bf16.msra.mxu0 %v275
    %295 = vmatpush.bf16.msra.mxu0 %v274
    %296 = vmatpush.bf16.msra.mxu0 %v273
    %297 = vmatmul.bf16.gmra.mxu0 %v120
    %v298 = vpop.f32.mrf.mxu0
    %v299 = vadd.f32 0.0, %v298
    %v300 = vpop.f32.mrf.mxu0
    %v301 = vadd.f32 0.0, %v300
    %302 = vdwg.mxu0
    %v319 = vunpack.c.l.b16 %v209
    %v320 = vunpack.c.l.b16 %v210
    %v321 = vunpack.c.l.b16 %v211
    %v322 = vunpack.c.l.b16 %v212
    %v323 = vunpack.c.l.b16 %v213
    %v324 = vunpack.c.l.b16 %v214
    %v325 = vunpack.c.l.b16 %v215
    %v326 = vunpack.c.l.b16 %v216
    %v327 = vunpack.c.l.b16 %v217
    %v328 = vunpack.c.l.b16 %v218
    %v329 = vunpack.c.l.b16 %v219
    %v330 = vunpack.c.l.b16 %v220
    %v331 = vunpack.c.l.b16 %v221
    %v332 = vunpack.c.l.b16 %v222
    %v333 = vunpack.c.l.b16 %v223
    %v334 = vunpack.c.l.b16 %v224
    %v335 = vpack.c.b16 %v320, %v319
    %v336 = vpack.c.b16 %v322, %v321
    %v337 = vpack.c.b16 %v324, %v323
    %v338 = vpack.c.b16 %v326, %v325
    %v339 = vpack.c.b16 %v328, %v327
    %v340 = vpack.c.b16 %v330, %v329
    %v341 = vpack.c.b16 %v332, %v331
    %v342 = vpack.c.b16 %v334, %v333
    %351 = vmatpush.bf16.msra.mxu0 %v342
    %352 = vmatpush.bf16.msra.mxu0 %v341
    %353 = vmatpush.bf16.msra.mxu0 %v340
    %354 = vmatpush.bf16.msra.mxu0 %v339
    %355 = vmatpush.bf16.msra.mxu0 %v338
    %356 = vmatpush.bf16.msra.mxu0 %v337
    %357 = vmatpush.bf16.msra.mxu0 %v336
    %358 = vmatpush.bf16.msra.mxu0 %v335
    %359 = vmatmul.bf16.gmra.mxu0 %v208
    %v360 = vpop.f32.mrf.mxu0
    %v361 = vadd.f32 %v299, %v360
    %v362 = vpop.f32.mrf.mxu0
    %v363 = vadd.f32 %v301, %v362
    %364 = vdwg.mxu0
    %v365 = vtanh.pop %v361
    %v366 = vtanh.pop %v363
    %367 = vst [vmem:[#allocation2] sm:$0xff] %v365
    %368 = vst [vmem:[#allocation2 + $0x8] sm:$0xff] %v366
    %v369 = vld [vmem:[%s7] sm:$0xf]
    %v370 = vld [vmem:[%s7 + $0x4] sm:$0xf]
    %v373 = vunpack.c.l.b16 %v369
    %v374 = vunpack.c.l.b16 %v370
    %v375 = vpack.c.b16 %v374, %v373
    %377 = vmatpush.bf16.msra.mxu0 0
    %378 = vmatpush.bf16.msra.mxu0 0
    %379 = vmatpush.bf16.msra.mxu0 0
    %380 = vmatpush.bf16.msra.mxu0 0
    %381 = vmatpush.bf16.msra.mxu0 0
    %382 = vmatpush.bf16.msra.mxu0 0
    %383 = vmatpush.bf16.msra.mxu0 0
    %384 = vmatpush.bf16.msra.mxu0 %v375
    %385 = vmatmul.bf16.gmra.mxu0 %v192
    %v386 = vpop.f32.mrf.mxu0
    %v387 = vadd.f32 0.0, %v386
    %v388 = vpop.f32.mrf.mxu0
    %v389 = vadd.f32 0.0, %v388
    %390 = vdwg.mxu0
    %391 = vst [vmem:[#allocation4] sm:$0xff] %v387
    %392 = vst [vmem:[#allocation4 + $0x8] sm:$0xff] %v389
    // Predicated region
    $region34: #{forward.1} parent=1 // pred_check
      _
    $region35: #{forward.1} parent=1 // pred_check_branch
      %394 = sbr.rel (0) target = $region37
    $region36: #{forward.1} parent=1 // pred_region
      %396 = vsyncadd [#allocation3], 0
      %s397 = sshll.u32 [#allocation2], 4
      %s398 = int_to_ptr.vmem [resolvable:$true] %s397
      %s399 = sshll.u32 %s8, 4
      %s400 = int_to_ptr.hbm [resolvable:$true] %s399
      %405 = dma.vmem_to_hbm [thread:$0]  %s398, 256, %s400, [#allocation3], 128, 128, 8
    $region37: #{forward.1} parent=1 // pred_fallthru
      _
    // Predicated region
    $region38: #{forward.1} parent=1 // pred_check
      _
    $region39: #{forward.1} parent=1 // pred_check_branch
      %407 = sbr.rel (0) target = $region41
    $region40: #{forward.1} parent=1 // pred_region
      %409 = vsyncadd [#allocation5], 0
      %s410 = sshll.u32 [#allocation4], 4
      %s411 = int_to_ptr.vmem [resolvable:$true] %s410
      %s412 = sshll.u32 %s9, 4
      %s413 = int_to_ptr.hbm [resolvable:$true] %s412
      %418 = dma.vmem_to_hbm [thread:$0]  %s411, 256, %s413, [#allocation5], 128, 128, 8
    $region41: #{forward.1} parent=1 // pred_fallthru
      _
    // Predicated region
    $region42: #{forward.1} parent=1 // pred_check
      _
    $region43: #{forward.1} parent=1 // pred_check_branch
      %420 = sbr.rel (0) target = $region45
    $region44: #{forward.1} parent=1 // pred_region
      %422 = dma.done [#allocation3], 256
    $region45: #{forward.1} parent=1 // pred_fallthru
      _
    // Predicated region
    $region46: #{forward.1} parent=1 // pred_check
      _
    $region47: #{forward.1} parent=1 // pred_check_branch
      %424 = sbr.rel (0) target = $region49
    $region48: #{forward.1} parent=1 // pred_region
      %426 = dma.done [#allocation5], 256
    $region49: #{forward.1} parent=1 // pred_fallthru
      _
    %427 = vsyncpa [#allocation3], 1
    %428 = vsyncpa [#allocation5], 1

</llo_original>
